<compile_context>
chip_gen: v7x
topology: tpu7x:2x2x1
jax: 0.10.0
libtpu: 0.0.40
codegen_flags: <defaults>
</compile_context>

<pallas_src>
import jax
import jax.numpy as jnp
from jax.experimental import pallas as pl
from jax.experimental.pallas import tpu as pltpu


def _round_up(x, m):
    return ((x + m - 1) // m) * m


def _make_kernel(seq_len):
    """Build the kernel; `seq_len` is the real (unpadded) sequence length."""

    def kernel(
        q_ref,      # (TB, Din)        VMEM
        keys_ref,   # (TB, S, Din)     VMEM
        waw_ref,    # (Din, Dout)      VMEM
        wab_ref,    # (1, Dout)        VMEM
        uaw_ref,    # (Din, Dout)      VMEM
        uab_ref,    # (1, Dout)        VMEM
        vaw_ref,    # (1, Dout)        VMEM  (Va weight stored as a row)
        vab_ref,    # (1,)             SMEM  (Va bias scalar)
        ctx_ref,    # (TB, Dout)       VMEM
        attn_ref,   # (TB, S)          VMEM  (lane-dense attention weights)
    ):
        tb, s_pad, din = keys_ref.shape
        dout = waw_ref.shape[1]

        # ---- projections: two dense MXU matmuls, f32 accumulation ----------
        q = q_ref[...]                                     # (TB, Din)
        k_flat = keys_ref[...].reshape(tb * s_pad, din)    # (TB*S, Din)

        qW = jnp.dot(q, waw_ref[...],
                     preferred_element_type=jnp.float32) + wab_ref[...]   # (TB, Dout)
        kU = jnp.dot(k_flat, uaw_ref[...],
                     preferred_element_type=jnp.float32) + uab_ref[...]   # (TB*S, Dout)
        kU = kU.reshape(tb, s_pad, dout)                   # (TB, S, Dout)

        # ---- additive score: Va . tanh(qW + kU) -----------------------------
        t = jnp.tanh(qW[:, None, :] + kU)                  # (TB, S, Dout)
        # Dout -> 1 projection as VPU multiply + lane reduction (no N=1 MXU
        # matmul); the result is already lane-dense with S on the lane axis.
        va = vaw_ref[...].reshape(1, 1, dout)
        scores = jnp.sum(t * va, axis=-1) + vab_ref[0]     # (TB, S)

        if s_pad != seq_len:
            # Mask padded sequence positions out of the softmax.
            pos = jax.lax.broadcasted_iota(jnp.int32, (tb, s_pad), 1)
            scores = jnp.where(pos < seq_len, scores, -1e30)

        # ---- softmax over the sequence axis (lane-dense reductions) --------
        m = jnp.max(scores, axis=-1, keepdims=True)        # (TB, 1)
        e = jnp.exp(scores - m)                            # (TB, S)
        denom = jnp.sum(e, axis=-1, keepdims=True)         # (TB, 1)
        attn = e / denom                                   # (TB, S)

        # ---- context: attention-weighted sum of the projected keys ---------
        ctx = jnp.sum(attn[:, :, None] * kU, axis=1)       # (TB, Dout)

        ctx_ref[...] = ctx.astype(ctx_ref.dtype)
        attn_ref[...] = attn.astype(attn_ref.dtype)

    return kernel


def simple_attention(query, keys, params, *, batch_tile=None):
    """query: (B, Din), keys: (B, S, Din).
    Returns (context (B, Dout), attention_weights (B, S, 1))."""
    query = query.astype(jnp.float32)
    keys = keys.astype(jnp.float32)

    B, Din = query.shape
    _, S, _ = keys.shape
    Dout = params["Wa_w"].shape[1]

    # Pad S to the f32 sublane multiple so the in-kernel
    # (TB, S, Din) <-> (TB*S, Din) reshape is layout-preserving.
    S_pad = _round_up(S, 8)

    # Batch tile: a multiple of 8 sublanes, large enough to fill the MXU M
    # dimension / amortize per-step overhead, small enough to keep the
    # double-buffered keys tile well inside scoped VMEM (v7x 64 MiB included).
    if batch_tile is None:
        keys_row_bytes = S_pad * Din * 4
        budget = 4 << 20                      # per keys buffer
        batch_tile = max(8, min(128, (budget // max(keys_row_bytes, 1)) // 8 * 8))
    tb = max(8, (min(batch_tile, _round_up(B, 8)) // 8) * 8)
    B_pad = _round_up(B, tb)

    if B_pad != B or S_pad != S:
        query = jnp.pad(query, ((0, B_pad - B), (0, 0)))
        keys = jnp.pad(keys, ((0, B_pad - B), (0, S_pad - S), (0, 0)))

    waw = params["Wa_w"].astype(jnp.float32)
    uaw = params["Ua_w"].astype(jnp.float32)
    wab = params["Wa_b"].reshape(1, Dout).astype(jnp.float32)
    uab = params["Ua_b"].reshape(1, Dout).astype(jnp.float32)
    vaw = params["Va_w"].reshape(1, Dout).astype(jnp.float32)   # (Dout,1) -> row
    vab = params["Va_b"].reshape(1).astype(jnp.float32)         # scalar in SMEM

    grid = (B_pad // tb,)
    out_shapes = (
        jax.ShapeDtypeStruct((B_pad, Dout), jnp.float32),
        jax.ShapeDtypeStruct((B_pad, S_pad), jnp.float32),      # lane-dense attn slab
    )
    rep2d = lambda shape: pl.BlockSpec(shape, lambda b: (0, 0))

    ctx, attn = pl.pallas_call(
        _make_kernel(S),
        out_shape=out_shapes,
        grid_spec=pltpu.PrefetchScalarGridSpec(
            num_scalar_prefetch=0,
            grid=grid,
            in_specs=[
                pl.BlockSpec((tb, Din), lambda b: (b, 0)),           # query tile
                pl.BlockSpec((tb, S_pad, Din), lambda b: (b, 0, 0)), # keys tile
                rep2d((Din, Dout)),                                  # Wa weight
                rep2d((1, Dout)),                                    # Wa bias
                rep2d((Din, Dout)),                                  # Ua weight
                rep2d((1, Dout)),                                    # Ua bias
                rep2d((1, Dout)),                                    # Va weight row
                pl.BlockSpec(memory_space=pltpu.MemorySpace.SMEM),   # Va bias scalar
            ],
            out_specs=[
                pl.BlockSpec((tb, Dout), lambda b: (b, 0)),          # context
                pl.BlockSpec((tb, S_pad), lambda b: (b, 0)),         # attention
            ],
        ),
        compiler_params=pltpu.CompilerParams(
            dimension_semantics=("parallel",),
        ),
    )(query, keys, waw, wab, uaw, uab, vaw, vab)

    ctx = ctx[:B]
    attn = attn[:B, :S, None]   # back to the PyTorch (B, S, 1) shape
    return ctx, attn


def simple_attention_ref(query, keys, params):
    """Pure-JAX reference mirroring the PyTorch forward."""
    q = query @ params["Wa_w"] + params["Wa_b"]                        # (B, Dout)
    k = keys @ params["Ua_w"] + params["Ua_b"]                         # (B, S, Dout)
    s = jnp.tanh(q[:, None, :] + k) @ params["Va_w"] + params["Va_b"]  # (B, S, 1)
    a = jax.nn.softmax(s, axis=1)                                      # (B, S, 1)
    ctx = jnp.sum(a * k, axis=1)                                       # (B, Dout)
    return ctx, a


if __name__ == "__main__":
    B, S, Din, Dout = 2, 8, 32, 32

    key = jax.random.PRNGKey(0)
    ks = jax.random.split(key, 8)
    # Deterministic parameter init (uniform like torch.nn.Linear default scale).
    bound_in = 1.0 / (Din ** 0.5)
    bound_out = 1.0 / (Dout ** 0.5)
    params = {
        "Wa_w": jax.random.uniform(ks[0], (Din, Dout), jnp.float32, -bound_in, bound_in),
        "Wa_b": jax.random.uniform(ks[1], (Dout,), jnp.float32, -bound_in, bound_in),
        "Ua_w": jax.random.uniform(ks[2], (Din, Dout), jnp.float32, -bound_in, bound_in),
        "Ua_b": jax.random.uniform(ks[3], (Dout,), jnp.float32, -bound_in, bound_in),
        "Va_w": jax.random.uniform(ks[4], (Dout, 1), jnp.float32, -bound_out, bound_out),
        "Va_b": jax.random.uniform(ks[5], (1,), jnp.float32, -bound_out, bound_out),
    }

    query = jax.random.normal(ks[6], (B, Din), jnp.float32)
    keys = jax.random.normal(ks[7], (B, S, Din), jnp.float32)

    ctx, attn = simple_attention(query, keys, params)
    ctx = jax.block_until_ready(ctx)
    attn = jax.block_until_ready(attn)

    ctx_ref, attn_ref = simple_attention_ref(query, keys, params)
    assert ctx.shape == (B, Dout) and attn.shape == (B, S, 1)
    assert jnp.allclose(ctx, ctx_ref, atol=2e-5, rtol=2e-5)
    assert jnp.allclose(attn, attn_ref, atol=2e-5, rtol=2e-5)

    print("KERNEL_OK")
</pallas_src>

<mosaic_0001>
module attributes {stable_mosaic.version = 11 : i64} {
  func.func @kernel(%arg0: i32, %arg1: memref<8x32xf32, #tpu.memory_space<vmem>>, %arg2: memref<8x8x32xf32, #tpu.memory_space<vmem>>, %arg3: memref<32x32xf32, #tpu.memory_space<vmem>>, %arg4: memref<1x32xf32, #tpu.memory_space<vmem>>, %arg5: memref<32x32xf32, #tpu.memory_space<vmem>>, %arg6: memref<1x32xf32, #tpu.memory_space<vmem>>, %arg7: memref<1x32xf32, #tpu.memory_space<vmem>>, %arg8: memref<1xf32, #tpu.memory_space<smem>>, %arg9: memref<8x32xf32, #tpu.memory_space<vmem>>, %arg10: memref<8x8xf32, #tpu.memory_space<vmem>>) attributes {dimension_semantics = [#tpu.dimension_semantics<parallel>], iteration_bounds = array<i64: 1>, scalar_prefetch = 0 : i64, scratch_operands = 0 : i64, tpu.core_type = #tpu.core_type<tc>, window_params = [{transform_indices = @transform_0, window_bounds = array<i64: 8, 32>}, {transform_indices = @transform_1, window_bounds = array<i64: 8, 8, 32>}, {pipeline_mode = #tpu.pipeline_mode<synchronous>, transform_indices = @transform_2, window_bounds = array<i64: 32, 32>}, {pipeline_mode = #tpu.pipeline_mode<synchronous>, transform_indices = @transform_3, window_bounds = array<i64: 1, 32>}, {pipeline_mode = #tpu.pipeline_mode<synchronous>, transform_indices = @transform_4, window_bounds = array<i64: 32, 32>}, {pipeline_mode = #tpu.pipeline_mode<synchronous>, transform_indices = @transform_5, window_bounds = array<i64: 1, 32>}, {pipeline_mode = #tpu.pipeline_mode<synchronous>, transform_indices = @transform_6, window_bounds = array<i64: 1, 32>}, {transform_indices = @transform_7, window_bounds = array<i64: 1>}, {transform_indices = @transform_8, window_bounds = array<i64: 8, 32>}, {transform_indices = @transform_9, window_bounds = array<i64: 8, 8>}]} {
    %c0 = arith.constant 0 : index
    %c0_0 = arith.constant 0 : index
    %0 = vector.load %arg1[%c0, %c0_0] : memref<8x32xf32, #tpu.memory_space<vmem>>, vector<8x32xf32>
    %c0_1 = arith.constant 0 : index
    %c0_2 = arith.constant 0 : index
    %c0_3 = arith.constant 0 : index
    %1 = vector.load %arg2[%c0_1, %c0_2, %c0_3] : memref<8x8x32xf32, #tpu.memory_space<vmem>>, vector<8x8x32xf32>
    %2 = vector.shape_cast %1 : vector<8x8x32xf32> to vector<64x32xf32>
    %c0_4 = arith.constant 0 : index
    %c0_5 = arith.constant 0 : index
    %3 = vector.load %arg3[%c0_4, %c0_5] : memref<32x32xf32, #tpu.memory_space<vmem>>, vector<32x32xf32>
    %cst = arith.constant dense<0.000000e+00> : vector<8x32xf32>
    %4 = tpu.matmul %0, %3, %cst {dimension_numbers = #tpu.dot_dimension_numbers<[1], [0], [0], [1], [0, 0, 1, 1], [], []>} : vector<8x32xf32>, vector<32x32xf32>, vector<8x32xf32> -> vector<8x32xf32>
    %c0_6 = arith.constant 0 : index
    %c0_7 = arith.constant 0 : index
    %5 = vector.load %arg4[%c0_6, %c0_7] : memref<1x32xf32, #tpu.memory_space<vmem>>, vector<1x32xf32>
    %6 = vector.broadcast %5 : vector<1x32xf32> to vector<8x32xf32>
    %7 = arith.addf %4, %6 : vector<8x32xf32>
    %c0_8 = arith.constant 0 : index
    %c0_9 = arith.constant 0 : index
    %8 = vector.load %arg5[%c0_8, %c0_9] : memref<32x32xf32, #tpu.memory_space<vmem>>, vector<32x32xf32>
    %cst_10 = arith.constant dense<0.000000e+00> : vector<64x32xf32>
    %9 = tpu.matmul %2, %8, %cst_10 {dimension_numbers = #tpu.dot_dimension_numbers<[1], [0], [0], [1], [0, 0, 1, 1], [], []>} : vector<64x32xf32>, vector<32x32xf32>, vector<64x32xf32> -> vector<64x32xf32>
    %c0_11 = arith.constant 0 : index
    %c0_12 = arith.constant 0 : index
    %10 = vector.load %arg6[%c0_11, %c0_12] : memref<1x32xf32, #tpu.memory_space<vmem>>, vector<1x32xf32>
    %11 = vector.broadcast %10 : vector<1x32xf32> to vector<64x32xf32>
    %12 = arith.addf %9, %11 : vector<64x32xf32>
    %13 = vector.shape_cast %12 : vector<64x32xf32> to vector<8x8x32xf32>
    %14 = vector.shape_cast %7 : vector<8x32xf32> to vector<8x1x32xf32>
    %15 = vector.broadcast %14 : vector<8x1x32xf32> to vector<8x8x32xf32>
    %16 = arith.addf %15, %13 : vector<8x8x32xf32>
    %17 = math.tanh %16 : vector<8x8x32xf32>
    %c0_13 = arith.constant 0 : index
    %c0_14 = arith.constant 0 : index
    %18 = vector.load %arg7[%c0_13, %c0_14] : memref<1x32xf32, #tpu.memory_space<vmem>>, vector<1x32xf32>
    %19 = vector.shape_cast %18 : vector<1x32xf32> to vector<1x1x32xf32>
    %20 = vector.broadcast %19 : vector<1x1x32xf32> to vector<8x8x32xf32>
    %21 = arith.mulf %17, %20 : vector<8x8x32xf32>
    %cst_15 = arith.constant dense<0.000000e+00> : vector<8x8xf32>
    %22 = vector.multi_reduction <add>, %21, %cst_15 [2] : vector<8x8x32xf32> to vector<8x8xf32>
    %c0_16 = arith.constant 0 : index
    %23 = memref.load %arg8[%c0_16] : memref<1xf32, #tpu.memory_space<smem>>
    %24 = vector.broadcast %23 : f32 to vector<8x8xf32>
    %25 = arith.addf %22, %24 : vector<8x8xf32>
    %cst_17 = arith.constant dense<0xFF800000> : vector<8xf32>
    %26 = vector.multi_reduction <maximumf>, %25, %cst_17 [1] : vector<8x8xf32> to vector<8xf32>
    %27 = vector.shape_cast %26 : vector<8xf32> to vector<8x1xf32>
    %28 = vector.broadcast %27 : vector<8x1xf32> to vector<8x8xf32>
    %29 = arith.subf %25, %28 : vector<8x8xf32>
    %30 = math.exp %29 : vector<8x8xf32>
    %cst_18 = arith.constant dense<0.000000e+00> : vector<8xf32>
    %31 = vector.multi_reduction <add>, %30, %cst_18 [1] : vector<8x8xf32> to vector<8xf32>
    %32 = vector.shape_cast %31 : vector<8xf32> to vector<8x1xf32>
    %33 = vector.broadcast %32 : vector<8x1xf32> to vector<8x8xf32>
    %34 = arith.divf %30, %33 : vector<8x8xf32>
    %35 = vector.shape_cast %34 : vector<8x8xf32> to vector<8x8x1xf32>
    %36 = vector.broadcast %35 : vector<8x8x1xf32> to vector<8x8x32xf32>
    %37 = arith.mulf %36, %13 : vector<8x8x32xf32>
    %cst_19 = arith.constant dense<0.000000e+00> : vector<8x32xf32>
    %38 = vector.multi_reduction <add>, %37, %cst_19 [1] : vector<8x8x32xf32> to vector<8x32xf32>
    %c0_20 = arith.constant 0 : index
    %c0_21 = arith.constant 0 : index
    %39 = vector.load %arg9[%c0_20, %c0_21] : memref<8x32xf32, #tpu.memory_space<vmem>>, vector<8x32xf32>
    tpu.vector_store %arg9[%c0_20, %c0_21], %38 {strides = array<i32>} : memref<8x32xf32, #tpu.memory_space<vmem>>, vector<8x32xf32>,
    %c0_22 = arith.constant 0 : index
    %c0_23 = arith.constant 0 : index
    %40 = vector.load %arg10[%c0_22, %c0_23] : memref<8x8xf32, #tpu.memory_space<vmem>>, vector<8x8xf32>
    tpu.vector_store %arg10[%c0_22, %c0_23], %34 {strides = array<i32>} : memref<8x8xf32, #tpu.memory_space<vmem>>, vector<8x8xf32>,
    return
  }
  func.func @transform_0(%arg0: i32) -> (i32, i32) {
    %c0_i32 = arith.constant 0 : i32
    %c0_i32_0 = arith.constant 0 : i32
    return %arg0, %c0_i32 : i32, i32
  }
  func.func @transform_1(%arg0: i32) -> (i32, i32, i32) {
    %c0_i32 = arith.constant 0 : i32
    %c0_i32_0 = arith.constant 0 : i32
    %c0_i32_1 = arith.constant 0 : i32
    return %arg0, %c0_i32, %c0_i32_0 : i32, i32, i32
  }
  func.func @transform_2(%arg0: i32) -> (i32, i32) {
    %c0_i32 = arith.constant 0 : i32
    %c0_i32_0 = arith.constant 0 : i32
    %c0_i32_1 = arith.constant 0 : i32
    return %c0_i32, %c0_i32_0 : i32, i32
  }
  func.func @transform_3(%arg0: i32) -> (i32, i32) {
    %c0_i32 = arith.constant 0 : i32
    %c0_i32_0 = arith.constant 0 : i32
    %c0_i32_1 = arith.constant 0 : i32
    return %c0_i32, %c0_i32_0 : i32, i32
  }
  func.func @transform_4(%arg0: i32) -> (i32, i32) {
    %c0_i32 = arith.constant 0 : i32
    %c0_i32_0 = arith.constant 0 : i32
    %c0_i32_1 = arith.constant 0 : i32
    return %c0_i32, %c0_i32_0 : i32, i32
  }
  func.func @transform_5(%arg0: i32) -> (i32, i32) {
    %c0_i32 = arith.constant 0 : i32
    %c0_i32_0 = arith.constant 0 : i32
    %c0_i32_1 = arith.constant 0 : i32
    return %c0_i32, %c0_i32_0 : i32, i32
  }
  func.func @transform_6(%arg0: i32) -> (i32, i32) {
    %c0_i32 = arith.constant 0 : i32
    %c0_i32_0 = arith.constant 0 : i32
    %c0_i32_1 = arith.constant 0 : i32
    return %c0_i32, %c0_i32_0 : i32, i32
  }
  func.func @transform_7(%arg0: i32) -> i32 {
    %c0_i32 = arith.constant 0 : i32
    %c0_i32_0 = arith.constant 0 : i32
    return %c0_i32 : i32
  }
  func.func @transform_8(%arg0: i32) -> (i32, i32) {
    %c0_i32 = arith.constant 0 : i32
    %c0_i32_0 = arith.constant 0 : i32
    return %arg0, %c0_i32 : i32, i32
  }
  func.func @transform_9(%arg0: i32) -> (i32, i32) {
    %c0_i32 = arith.constant 0 : i32
    %c0_i32_0 = arith.constant 0 : i32
    return %arg0, %c0_i32 : i32, i32
  }
}

</mosaic_0001>

<llo_original>
// kernel: tpu_custom_call.1
$region0: #{tpu_custom_call.1}
  #allocation0 [shape = 'u32[]', space=smem, size = 0x4, offset = 0x4, fixed_abs, tag = 'smem constant byte address 0x4 - core index']
  #allocation1 [shape = 'u32[144,128]{1,0:T(1,128)}', space=vmem, size = 0x12000, scoped, tag = 'internal scratch']
  #allocation2 [shape = 'f32[1]{0:T(128)S(6)}', space=smem, size = 0x200, scoped, tag = 'scoped memory for tpu_custom_call.1']
  %s0 = inlined_call_operand.hbm [shape: f32[8,32], index: 0, kind: input, shape index: {}]
  %s1 = inlined_call_operand.hbm [shape: f32[8,8,32], index: 1, kind: input, shape index: {}]
  %s2 = inlined_call_operand.hbm [shape: f32[32,32], index: 2, kind: input, shape index: {}]
  %s3 = inlined_call_operand.vmem [shape: f32[1,32], index: 3, kind: input, shape index: {}]
  %s4 = inlined_call_operand.hbm [shape: f32[32,32], index: 4, kind: input, shape index: {}]
  %s5 = inlined_call_operand.vmem [shape: f32[1,32], index: 5, kind: input, shape index: {}]
  %s6 = inlined_call_operand.vmem [shape: f32[1,32], index: 6, kind: input, shape index: {}]
  %s7 = inlined_call_operand.<no memory space> [shape: f32[1], index: 7, kind: input, shape index: {}]
  %s8 = inlined_call_operand.hbm [shape: f32[8,32], index: 8, kind: output, shape index: {0}]
  %s9 = inlined_call_operand.hbm [shape: f32[8,8], index: 9, kind: output, shape index: {1}]
  %10 = xla_tuple %s8, %s9
  %s11 = sld [smem:[#allocation0]]
  $region66: #{tpu_custom_call.1} parent=0
    _
  %s13 = ssub.s32 1, %s11
  %s14 = scalar_select 0, %s13, %s11
  %15 = sst [smem:[#allocation2]] %s7
  $region1: #{tpu_custom_call.1} parent=0
    #allocation3 [shape = 'u8[4096]{0}', space=vmem, size = 0x1000, scoped, tag = 'input window, operand 0, single buffered']
    #allocation4 [shape = 's32[1]{0}', space=sflag, size = 0x4, scoped, tag = 'scoped memory for tpu_custom_call.1']
    #allocation5 [shape = 's32[1]{0}', space=sflag, size = 0x4, scoped, tag = 'scoped memory for tpu_custom_call.1']
    #allocation6 [shape = 'u8[32768]{0}', space=vmem, size = 0x8000, scoped, tag = 'input window, operand 1, single buffered']
    #allocation7 [shape = 's32[1]{0}', space=sflag, size = 0x4, scoped, tag = 'scoped memory for tpu_custom_call.1']
    #allocation8 [shape = 'u8[16384]{0}', space=vmem, size = 0x4000, scoped, tag = 'input window, operand 2, single buffered']
    #allocation9 [shape = 'u8[16384]{0}', space=vmem, size = 0x4000, scoped, tag = 'input window, operand 4, single buffered']
    #allocation10 [shape = 's32[1]{0}', space=sflag, size = 0x4, scoped, tag = 'scoped memory for tpu_custom_call.1']
    #allocation11 [shape = 'u8[4096]{0}', space=vmem, size = 0x1000, scoped, tag = 'output window, operand 0, single buffered']
    #allocation12 [shape = 'u8[4096]{0}', space=vmem, size = 0x1000, scoped, tag = 'output window, operand 1, single buffered']
    #allocation13 [shape = 's32[1]{0}', space=sflag, size = 0x4, scoped, tag = 'scoped memory for tpu_custom_call.1']
    %16 = vsyncpa [#allocation4], 0
    %17 = vsyncpa [#allocation7], 0
    %18 = vsyncpa [#allocation10], 0
    %19 = vsyncpa [#allocation5], 0
    %20 = vsyncpa [#allocation13], 0
    // Predicated region
    $region2: #{tpu_custom_call.1} parent=1 // pred_check
      _
    $region3: #{tpu_custom_call.1} parent=1 // pred_check_branch
      %22 = sbr.rel (0) target = $region5
    $region4: #{tpu_custom_call.1} parent=1 // pred_region
      %s24 = ssub.s32 128, 128
      %25 = vsyncadd [#allocation4], %s24
      %s27 = sshll.u32 [#allocation3], 4
      %s28 = int_to_ptr.vmem [resolvable:$true] %s27
      %30 = dma.hbm_to_vmem [thread:$0]  %s0, 128, %s28, [#allocation4]
    $region5: #{tpu_custom_call.1} parent=1 // pred_fallthru
      _
    // Predicated region
    $region6: #{tpu_custom_call.1} parent=1 // pred_check
      _
    $region7: #{tpu_custom_call.1} parent=1 // pred_check_branch
      %32 = sbr.rel (0) target = $region9
    $region8: #{tpu_custom_call.1} parent=1 // pred_region
      %s34 = ssub.s32 1024, 1024
      %35 = vsyncadd [#allocation7], %s34
      %s36 = sshll.u32 [#allocation6], 4
      %s37 = int_to_ptr.vmem [resolvable:$true] %s36
      %42 = dma.hbm_to_vmem [thread:$0]  %s1, 1024, %s37, [#allocation7], 128, 128, 8
    $region9: #{tpu_custom_call.1} parent=1 // pred_fallthru
      _
    // Predicated region
    $region10: #{tpu_custom_call.1} parent=1 // pred_check
      _
    $region11: #{tpu_custom_call.1} parent=1 // pred_check_branch
      %44 = sbr.rel (0) target = $region13
    $region12: #{tpu_custom_call.1} parent=1 // pred_region
      %s46 = ssub.s32 512, 512
      %47 = vsyncadd [#allocation7], %s46
      %s48 = sshll.u32 [#allocation8], 4
      %s49 = int_to_ptr.vmem [resolvable:$true] %s48
      %54 = dma.hbm_to_vmem [thread:$0]  %s2, 512, %s49, [#allocation7], 128, 128, 8
    $region13: #{tpu_custom_call.1} parent=1 // pred_fallthru
      _
    // Predicated region
    $region14: #{tpu_custom_call.1} parent=1 // pred_check
      _
    $region15: #{tpu_custom_call.1} parent=1 // pred_check_branch
      %56 = sbr.rel (0) target = $region17
    $region16: #{tpu_custom_call.1} parent=1 // pred_region
      _
    $region17: #{tpu_custom_call.1} parent=1 // pred_fallthru
      _
    // Predicated region
    $region18: #{tpu_custom_call.1} parent=1 // pred_check
      _
    $region19: #{tpu_custom_call.1} parent=1 // pred_check_branch
      %58 = sbr.rel (0) target = $region21
    $region20: #{tpu_custom_call.1} parent=1 // pred_region
      %s60 = ssub.s32 512, 512
      %61 = vsyncadd [#allocation10], %s60
      %s62 = sshll.u32 [#allocation9], 4
      %s63 = int_to_ptr.vmem [resolvable:$true] %s62
      %68 = dma.hbm_to_vmem [thread:$0]  %s4, 512, %s63, [#allocation10], 128, 128, 8
    $region21: #{tpu_custom_call.1} parent=1 // pred_fallthru
      _
    // Predicated region
    $region22: #{tpu_custom_call.1} parent=1 // pred_check
      _
    $region23: #{tpu_custom_call.1} parent=1 // pred_check_branch
      %70 = sbr.rel (0) target = $region25
    $region24: #{tpu_custom_call.1} parent=1 // pred_region
      _
    $region25: #{tpu_custom_call.1} parent=1 // pred_fallthru
      _
    // Predicated region
    $region26: #{tpu_custom_call.1} parent=1 // pred_check
      _
    $region27: #{tpu_custom_call.1} parent=1 // pred_check_branch
      %72 = sbr.rel (0) target = $region29
    $region28: #{tpu_custom_call.1} parent=1 // pred_region
      _
    $region29: #{tpu_custom_call.1} parent=1 // pred_fallthru
      _
    // Predicated region
    $region30: #{tpu_custom_call.1} parent=1 // pred_check
      _
    $region31: #{tpu_custom_call.1} parent=1 // pred_check_branch
      %74 = sbr.rel (0) target = $region33
    $region32: #{tpu_custom_call.1} parent=1 // pred_region
      _
    $region33: #{tpu_custom_call.1} parent=1 // pred_fallthru
      _
    // Predicated region
    $region34: #{tpu_custom_call.1} parent=1 // pred_check
      _
    $region35: #{tpu_custom_call.1} parent=1 // pred_check_branch
      %76 = sbr.rel (0) target = $region37
    $region36: #{tpu_custom_call.1} parent=1 // pred_region
      %77 = dma.done [#allocation4], 128
    $region37: #{tpu_custom_call.1} parent=1 // pred_fallthru
      _
    // Predicated region
    $region38: #{tpu_custom_call.1} parent=1 // pred_check
      _
    $region39: #{tpu_custom_call.1} parent=1 // pred_check_branch
      %79 = sbr.rel (0) target = $region41
    $region40: #{tpu_custom_call.1} parent=1 // pred_region
      %80 = dma.done [#allocation7], 1024
    $region41: #{tpu_custom_call.1} parent=1 // pred_fallthru
      _
    // Predicated region
    $region42: #{tpu_custom_call.1} parent=1 // pred_check
      _
    $region43: #{tpu_custom_call.1} parent=1 // pred_check_branch
      %82 = sbr.rel (0) target = $region45
    $region44: #{tpu_custom_call.1} parent=1 // pred_region
      %83 = dma.done [#allocation7], 512
    $region45: #{tpu_custom_call.1} parent=1 // pred_fallthru
      _
    // Predicated region
    $region46: #{tpu_custom_call.1} parent=1 // pred_check
      _
    $region47: #{tpu_custom_call.1} parent=1 // pred_check_branch
      %85 = sbr.rel (0) target = $region49
    $region48: #{tpu_custom_call.1} parent=1 // pred_region
      %86 = dma.done [#allocation10], 512
    $region49: #{tpu_custom_call.1} parent=1 // pred_fallthru
      _
    %v87 = vld [vmem:[#allocation3] sm:$0xff]
    %v88 = vld [vmem:[#allocation6] sm:$0xff]
    %v89 = vld [vmem:[#allocation6 + $0x8] sm:$0xff]
    %v90 = vld [vmem:[#allocation6 + $0x10] sm:$0xff]
    %v91 = vld [vmem:[#allocation6 + $0x18] sm:$0xff]
    %v92 = vld [vmem:[#allocation6 + $0x20] sm:$0xff]
    %v93 = vld [vmem:[#allocation6 + $0x28] sm:$0xff]
    %v94 = vld [vmem:[#allocation6 + $0x30] sm:$0xff]
    %v95 = vld [vmem:[#allocation6 + $0x38] sm:$0xff]
    %v96 = vld [vmem:[#allocation8] sm:$0xff]
    %v97 = vld [vmem:[#allocation8 + $0x8] sm:$0xff]
    %v98 = vld [vmem:[#allocation8 + $0x10] sm:$0xff]
    %v99 = vld [vmem:[#allocation8 + $0x18] sm:$0xff]
    %v100 = vld [vmem:[%s3] sm:$0x1]
    %v102 = vlaneseq
    %v103 = vshrl.u32 %v102, 7
    %v104 = vsub.s32 0, %v103
    %v105 = vrot.slane %v100, %v104
    %vm107 = vcmask 261120
    %v109 = vsel %vm107, %v87, 0
    %111 = vmatprep.subr.mxu0 0.0
    %112 = vmatpush1.msra.mxu0 %v96
    %113 = vmatprep.subr.mxu0 0.0
    %114 = vmatpush1.msra.mxu0 %v97
    %115 = vmatprep.subr.mxu0 0.0
    %116 = vmatpush1.msra.mxu0 %v98
    %117 = vmatprep.subr.mxu0 0.0
    %118 = vmatpush1.msra.mxu0 %v99
    %119 = vmatprep.subr.mxu0 0.0
    %120 = vmatpush1.msra.mxu0 0.0
    %121 = vmatprep.subr.mxu0 0.0
    %122 = vmatpush1.msra.mxu0 0.0
    %123 = vmatprep.subr.mxu0 0.0
    %124 = vmatpush1.msra.mxu0 0.0
    %125 = vmatprep.subr.mxu0 0.0
    %126 = vmatpush1.msra.mxu0 0.0
    %127 = vmatprep.subr.mxu0 0.0
    %128 = vmatpush1.msra.mxu0 0.0
    %129 = vmatprep.subr.mxu0 0.0
    %130 = vmatpush1.msra.mxu0 0.0
    %131 = vmatprep.subr.mxu0 0.0
    %132 = vmatpush1.msra.mxu0 0.0
    %133 = vmatprep.subr.mxu0 0.0
    %134 = vmatpush1.msra.mxu0 0.0
    %135 = vmatprep.subr.mxu0 0.0
    %136 = vmatpush1.msra.mxu0 0.0
    %137 = vmatprep.subr.mxu0 0.0
    %138 = vmatpush1.msra.mxu0 0.0
    %139 = vmatprep.subr.mxu0 0.0
    %140 = vmatpush1.msra.mxu0 0.0
    %141 = vmatprep.subr.mxu0 0.0
    %142 = vmatpush1.msra.mxu0 0.0
    %143 = vmatprep.subr.mxu0 0.0
    %144 = vmatpush1.msra.mxu0 0.0
    %145 = vmatprep.subr.mxu0 0.0
    %146 = vmatpush1.msra.mxu0 0.0
    %147 = vmatprep.subr.mxu0 0.0
    %148 = vmatpush1.msra.mxu0 0.0
    %149 = vmatprep.subr.mxu0 0.0
    %150 = vmatpush1.msra.mxu0 0.0
    %151 = vmatprep.subr.mxu0 0.0
    %152 = vmatpush1.msra.mxu0 0.0
    %153 = vmatprep.subr.mxu0 0.0
    %154 = vmatpush1.msra.mxu0 0.0
    %155 = vmatprep.subr.mxu0 0.0
    %156 = vmatpush1.msra.mxu0 0.0
    %157 = vmatprep.subr.mxu0 0.0
    %158 = vmatpush1.msra.mxu0 0.0
    %159 = vmatprep.subr.mxu0 0.0
    %160 = vmatpush1.msra.mxu0 0.0
    %161 = vmatprep.subr.mxu0 0.0
    %162 = vmatpush1.msra.mxu0 0.0
    %163 = vmatprep.subr.mxu0 0.0
    %164 = vmatpush1.msra.mxu0 0.0
    %165 = vmatprep.subr.mxu0 0.0
    %166 = vmatpush1.msra.mxu0 0.0
    %167 = vmatprep.subr.mxu0 0.0
    %168 = vmatpush1.msra.mxu0 0.0
    %169 = vmatprep.subr.mxu0 0.0
    %170 = vmatpush1.msra.mxu0 0.0
    %171 = vmatprep.subr.mxu0 0.0
    %172 = vmatpush1.msra.mxu0 0.0
    %173 = vmatprep.subr.mxu0 0.0
    %174 = vmatpush1.msra.mxu0 0.0
    %175 = vmatprep.mubr.f32.mxu0 0.0
    %176 = vmatmul.mubr.f32.gmra.mrb[0].mxu0 %v109
    %v177 = vpop.f32.mrb[0].mxu0
    %v178 = vadd.f32 %v105, %v177
    %v179 = vpop.f32.mrb[0].mxu0
    %180 = vdwg.mxu0
    %v181 = vld [vmem:[#allocation9] sm:$0xff]
    %v182 = vld [vmem:[#allocation9 + $0x8] sm:$0xff]
    %v183 = vld [vmem:[#allocation9 + $0x10] sm:$0xff]
    %v184 = vld [vmem:[#allocation9 + $0x18] sm:$0xff]
    %v185 = vld [vmem:[%s5] sm:$0x1]
    %v187 = vlaneseq
    %v188 = vshrl.u32 %v187, 7
    %v189 = vsub.s32 0, %v188
    %v190 = vrot.slane %v185, %v189
    %v193 = vsel %vm107, %v88, 0
    %v196 = vsel %vm107, %v89, 0
    %v199 = vsel %vm107, %v90, 0
    %v202 = vsel %vm107, %v91, 0
    %v205 = vsel %vm107, %v92, 0
    %v208 = vsel %vm107, %v93, 0
    %v211 = vsel %vm107, %v94, 0
    %v214 = vsel %vm107, %v95, 0
    %216 = vmatprep.subr.mxu0 0.0
    %217 = vmatpush1.msra.mxu0 %v181
    %218 = vmatprep.subr.mxu0 0.0
    %219 = vmatpush1.msra.mxu0 %v182
    %220 = vmatprep.subr.mxu0 0.0
    %221 = vmatpush1.msra.mxu0 %v183
    %222 = vmatprep.subr.mxu0 0.0
    %223 = vmatpush1.msra.mxu0 %v184
    %224 = vmatprep.subr.mxu0 0.0
    %225 = vmatpush1.msra.mxu0 0.0
    %226 = vmatprep.subr.mxu0 0.0
    %227 = vmatpush1.msra.mxu0 0.0
    %228 = vmatprep.subr.mxu0 0.0
    %229 = vmatpush1.msra.mxu0 0.0
    %230 = vmatprep.subr.mxu0 0.0
    %231 = vmatpush1.msra.mxu0 0.0
    %232 = vmatprep.subr.mxu0 0.0
    %233 = vmatpush1.msra.mxu0 0.0
    %234 = vmatprep.subr.mxu0 0.0
    %235 = vmatpush1.msra.mxu0 0.0
    %236 = vmatprep.subr.mxu0 0.0
    %237 = vmatpush1.msra.mxu0 0.0
    %238 = vmatprep.subr.mxu0 0.0
    %239 = vmatpush1.msra.mxu0 0.0
    %240 = vmatprep.subr.mxu0 0.0
    %241 = vmatpush1.msra.mxu0 0.0
    %242 = vmatprep.subr.mxu0 0.0
    %243 = vmatpush1.msra.mxu0 0.0
    %244 = vmatprep.subr.mxu0 0.0
    %245 = vmatpush1.msra.mxu0 0.0
    %246 = vmatprep.subr.mxu0 0.0
    %247 = vmatpush1.msra.mxu0 0.0
    %248 = vmatprep.subr.mxu0 0.0
    %249 = vmatpush1.msra.mxu0 0.0
    %250 = vmatprep.subr.mxu0 0.0
    %251 = vmatpush1.msra.mxu0 0.0
    %252 = vmatprep.subr.mxu0 0.0
    %253 = vmatpush1.msra.mxu0 0.0
    %254 = vmatprep.subr.mxu0 0.0
    %255 = vmatpush1.msra.mxu0 0.0
    %256 = vmatprep.subr.mxu0 0.0
    %257 = vmatpush1.msra.mxu0 0.0
    %258 = vmatprep.subr.mxu0 0.0
    %259 = vmatpush1.msra.mxu0 0.0
    %260 = vmatprep.subr.mxu0 0.0
    %261 = vmatpush1.msra.mxu0 0.0
    %262 = vmatprep.subr.mxu0 0.0
    %263 = vmatpush1.msra.mxu0 0.0
    %264 = vmatprep.subr.mxu0 0.0
    %265 = vmatpush1.msra.mxu0 0.0
    %266 = vmatprep.subr.mxu0 0.0
    %267 = vmatpush1.msra.mxu0 0.0
    %268 = vmatprep.subr.mxu0 0.0
    %269 = vmatpush1.msra.mxu0 0.0
    %270 = vmatprep.subr.mxu0 0.0
    %271 = vmatpush1.msra.mxu0 0.0
    %272 = vmatprep.subr.mxu0 0.0
    %273 = vmatpush1.msra.mxu0 0.0
    %274 = vmatprep.subr.mxu0 0.0
    %275 = vmatpush1.msra.mxu0 0.0
    %276 = vmatprep.subr.mxu0 0.0
    %277 = vmatpush1.msra.mxu0 0.0
    %278 = vmatprep.subr.mxu0 0.0
    %279 = vmatpush1.msra.mxu0 0.0
    %280 = vmatprep.mubr.f32.mxu0 0.0
    %281 = vmatmul.mubr.f32.gmra.mrb[0].mxu0 %v193
    %v282 = vpop.f32.mrb[0].mxu0
    %v283 = vadd.f32 %v190, %v282
    %v284 = vpop.f32.mrb[0].mxu0
    %285 = vmatprep.mubr.f32.mxu0 0.0
    %286 = vmatmul.mubr.f32.gmra.mrb[0].mxu0 %v196
    %v287 = vpop.f32.mrb[0].mxu0
    %v288 = vadd.f32 %v190, %v287
    %v289 = vpop.f32.mrb[0].mxu0
    %290 = vmatprep.mubr.f32.mxu0 0.0
    %291 = vmatmul.mubr.f32.gmra.mrb[0].mxu0 %v199
    %v292 = vpop.f32.mrb[0].mxu0
    %v293 = vadd.f32 %v190, %v292
    %v294 = vpop.f32.mrb[0].mxu0
    %295 = vmatprep.mubr.f32.mxu0 0.0
    %296 = vmatmul.mubr.f32.gmra.mrb[0].mxu0 %v202
    %v297 = vpop.f32.mrb[0].mxu0
    %v298 = vadd.f32 %v190, %v297
    %v299 = vpop.f32.mrb[0].mxu0
    %300 = vmatprep.mubr.f32.mxu0 0.0
    %301 = vmatmul.mubr.f32.gmra.mrb[0].mxu0 %v205
    %v302 = vpop.f32.mrb[0].mxu0
    %v303 = vadd.f32 %v190, %v302
    %v304 = vpop.f32.mrb[0].mxu0
    %305 = vmatprep.mubr.f32.mxu0 0.0
    %306 = vmatmul.mubr.f32.gmra.mrb[0].mxu0 %v208
    %v307 = vpop.f32.mrb[0].mxu0
    %v308 = vadd.f32 %v190, %v307
    %v309 = vpop.f32.mrb[0].mxu0
    %310 = vmatprep.mubr.f32.mxu0 0.0
    %311 = vmatmul.mubr.f32.gmra.mrb[0].mxu0 %v211
    %v312 = vpop.f32.mrb[0].mxu0
    %v313 = vadd.f32 %v190, %v312
    %v314 = vpop.f32.mrb[0].mxu0
    %315 = vmatprep.mubr.f32.mxu0 0.0
    %316 = vmatmul.mubr.f32.gmra.mrb[0].mxu0 %v214
    %v317 = vpop.f32.mrb[0].mxu0
    %v318 = vadd.f32 %v190, %v317
    %v319 = vpop.f32.mrb[0].mxu0
    %320 = vdwg.mxu0
    %v322 = vcombine.high %v178, %v178
    %v324 = vunpack.c.l.s4 1966171168
    %v325 = vunpack.c.0.s8 %v324
    %v326 = vlaneseq
    %v327 = vshrl.u32 %v326, 7
    %v328 = vsub.s32 %v325, %v327
    %v329 = vrot.slane %v178, %v328
    %v331 = vunpack.c.l.s4 1966171168
    %v332 = vunpack.c.0.s8 %v331
    %v333 = vlaneseq
    %v334 = vshrl.u32 %v333, 7
    %v335 = vsub.s32 %v332, %v334
    %v336 = vrot.slane %v322, %v335
    %v337 = vcombine.high %v329, %v329
    %v338 = vcombine.high %v336, %v336
    %v340 = vunpack.c.l.s4 1966171168
    %v341 = vunpack.c.0.s8 %v340
    %v342 = vlaneseq
    %v343 = vshrl.u32 %v342, 7
    %v344 = vsub.s32 %v341, %v343
    %v345 = vrot.slane %v329, %v344
    %v347 = vunpack.c.l.s4 1966171168
    %v348 = vunpack.c.0.s8 %v347
    %v349 = vlaneseq
    %v350 = vshrl.u32 %v349, 7
    %v351 = vsub.s32 %v348, %v350
    %v352 = vrot.slane %v336, %v351
    %v354 = vunpack.c.l.s4 1966171168
    %v355 = vunpack.c.0.s8 %v354
    %v356 = vlaneseq
    %v357 = vshrl.u32 %v356, 7
    %v358 = vsub.s32 %v355, %v357
    %v359 = vrot.slane %v337, %v358
    %v361 = vunpack.c.l.s4 1966171168
    %v362 = vunpack.c.0.s8 %v361
    %v363 = vlaneseq
    %v364 = vshrl.u32 %v363, 7
    %v365 = vsub.s32 %v362, %v364
    %v366 = vrot.slane %v338, %v365
    %v367 = vcombine.high %v345, %v345
    %v368 = vcombine.high %v352, %v352
    %v369 = vcombine.high %v359, %v359
    %v370 = vcombine.high %v366, %v366
    %v371 = vlaneseq
    %v372 = vshrl.u32 %v371, 7
    %v373 = vsub.s32 0, %v372
    %v374 = vrot.slane %v345, %v373
    %v375 = vlaneseq
    %v376 = vshrl.u32 %v375, 7
    %v377 = vsub.s32 0, %v376
    %v378 = vrot.slane %v359, %v377
    %v379 = vlaneseq
    %v380 = vshrl.u32 %v379, 7
    %v381 = vsub.s32 0, %v380
    %v382 = vrot.slane %v367, %v381
    %v383 = vlaneseq
    %v384 = vshrl.u32 %v383, 7
    %v385 = vsub.s32 0, %v384
    %v386 = vrot.slane %v369, %v385
    %v387 = vlaneseq
    %v388 = vshrl.u32 %v387, 7
    %v389 = vsub.s32 0, %v388
    %v390 = vrot.slane %v352, %v389
    %v391 = vlaneseq
    %v392 = vshrl.u32 %v391, 7
    %v393 = vsub.s32 0, %v392
    %v394 = vrot.slane %v366, %v393
    %v395 = vlaneseq
    %v396 = vshrl.u32 %v395, 7
    %v397 = vsub.s32 0, %v396
    %v398 = vrot.slane %v368, %v397
    %v399 = vlaneseq
    %v400 = vshrl.u32 %v399, 7
    %v401 = vsub.s32 0, %v400
    %v402 = vrot.slane %v370, %v401
    %v411 = vadd.f32 %v374, %v283
    %v412 = vadd.f32 %v378, %v288
    %v413 = vadd.f32 %v382, %v293
    %v414 = vadd.f32 %v386, %v298
    %v415 = vadd.f32 %v390, %v303
    %v416 = vadd.f32 %v394, %v308
    %v417 = vadd.f32 %v398, %v313
    %v418 = vadd.f32 %v402, %v318
    %v419 = vtanh.pop %v411
    %v420 = vtanh.pop %v412
    %v421 = vtanh.pop %v413
    %v422 = vtanh.pop %v414
    %v423 = vtanh.pop %v415
    %v424 = vtanh.pop %v416
    %v425 = vtanh.pop %v417
    %v426 = vtanh.pop %v418
    %v427 = vld [vmem:[%s6] sm:$0x1]
    %v429 = vlaneseq
    %v430 = vshrl.u32 %v429, 7
    %v431 = vsub.s32 0, %v430
    %v432 = vrot.slane %v427, %v431
    %v434 = vmul.f32 %v419, %v432
    %v435 = vmul.f32 %v420, %v432
    %v436 = vmul.f32 %v421, %v432
    %v437 = vmul.f32 %v422, %v432
    %v438 = vmul.f32 %v423, %v432
    %v439 = vmul.f32 %v424, %v432
    %v440 = vmul.f32 %v425, %v432
    %v441 = vmul.f32 %v426, %v432
    %v442 = vsel %vm107, %v434, 0.0
    %443 = vadd.xlane.f32.xlu0 %v442
    %v444 = vpop.xlane.xlu0 %443
    %v445 = vsel %vm107, %v435, 0.0
    %446 = vadd.xlane.f32.xlu0 %v445
    %v447 = vpop.xlane.xlu0 %446
    %v448 = vsel %vm107, %v436, 0.0
    %449 = vadd.xlane.f32.xlu0 %v448
    %v450 = vpop.xlane.xlu0 %449
    %v451 = vsel %vm107, %v437, 0.0
    %452 = vadd.xlane.f32.xlu0 %v451
    %v453 = vpop.xlane.xlu0 %452
    %v454 = vsel %vm107, %v438, 0.0
    %455 = vadd.xlane.f32.xlu0 %v454
    %v456 = vpop.xlane.xlu0 %455
    %v457 = vsel %vm107, %v439, 0.0
    %458 = vadd.xlane.f32.xlu0 %v457
    %v459 = vpop.xlane.xlu0 %458
    %v460 = vsel %vm107, %v440, 0.0
    %461 = vadd.xlane.f32.xlu0 %v460
    %v462 = vpop.xlane.xlu0 %461
    %v463 = vsel %vm107, %v441, 0.0
    %464 = vadd.xlane.f32.xlu0 %v463
    %v465 = vpop.xlane.xlu0 %464
    %s466 = sld [smem:[#allocation2]]
    %v467 = vstv %s466
    %v468 = vadd.f32 %v444, %v467
    %v469 = vadd.f32 %v447, %v467
    %v470 = vadd.f32 %v450, %v467
    %v471 = vadd.f32 %v453, %v467
    %v472 = vadd.f32 %v456, %v467
    %v473 = vadd.f32 %v459, %v467
    %v474 = vadd.f32 %v462, %v467
    %v475 = vadd.f32 %v465, %v467
    %v484 = vlaneseq
    %v485 = vand.u32 %v484, 127
    %v486 = vlaneseq
    %v487 = vshrl.u32 %v486, 7
    %v488 = vsub.s32 %v485, %v487
    %v489 = vrot.slane %v468, %v488
    %v490 = vlaneseq
    %v491 = vshrl.u32 %v490, 7
    %v492 = vsub.s32 %v485, %v491
    %v493 = vrot.slane %v469, %v492
    %v494 = vlaneseq
    %v495 = vshrl.u32 %v494, 7
    %v496 = vsub.s32 %v485, %v495
    %v497 = vrot.slane %v470, %v496
    %v498 = vlaneseq
    %v499 = vshrl.u32 %v498, 7
    %v500 = vsub.s32 %v485, %v499
    %v501 = vrot.slane %v471, %v500
    %v502 = vlaneseq
    %v503 = vshrl.u32 %v502, 7
    %v504 = vsub.s32 %v485, %v503
    %v505 = vrot.slane %v472, %v504
    %v506 = vlaneseq
    %v507 = vshrl.u32 %v506, 7
    %v508 = vsub.s32 %v485, %v507
    %v509 = vrot.slane %v473, %v508
    %v510 = vlaneseq
    %v511 = vshrl.u32 %v510, 7
    %v512 = vsub.s32 %v485, %v511
    %v513 = vrot.slane %v474, %v512
    %v514 = vlaneseq
    %v515 = vshrl.u32 %v514, 7
    %v516 = vsub.s32 %v485, %v515
    %v517 = vrot.slane %v475, %v516
    %vm518 = vcmask 1041409
    %v519 = vsel %vm518, %v493, %v489
    %vm520 = vcmask 1042434
    %v521 = vsel %vm520, %v497, %v519
    %vm522 = vcmask 1043459
    %v523 = vsel %vm522, %v501, %v521
    %vm524 = vcmask 1044484
    %v525 = vsel %vm524, %v505, %v523
    %vm526 = vcmask 1045509
    %v527 = vsel %vm526, %v509, %v525
    %vm528 = vcmask 1046534
    %v529 = vsel %vm528, %v513, %v527
    %vm530 = vcmask 1047559
    %v531 = vsel %vm530, %v517, %v529
    %vm533 = vcmask 64512
    %v534 = vsel %vm533, %v531, -inf
    %535 = vmax.xlane.f32.xlu0 %v534
    %v536 = vpop.xlane.xlu0 %535
    %v538 = vlaneseq
    %v539 = vshrl.u32 %v538, 7
    %v540 = vsub.s32 0, %v539
    %v541 = vrot.slane %v536, %v540
    %v542 = vlaneseq
    %v543 = vshrl.u32 %v542, 7
    %v544 = vsub.s32 1, %v543
    %v545 = vrot.slane %v536, %v544
    %v546 = vlaneseq
    %v547 = vshrl.u32 %v546, 7
    %v548 = vsub.s32 2, %v547
    %v549 = vrot.slane %v536, %v548
    %v550 = vlaneseq
    %v551 = vshrl.u32 %v550, 7
    %v552 = vsub.s32 3, %v551
    %v553 = vrot.slane %v536, %v552
    %v554 = vlaneseq
    %v555 = vshrl.u32 %v554, 7
    %v556 = vsub.s32 4, %v555
    %v557 = vrot.slane %v536, %v556
    %v558 = vlaneseq
    %v559 = vshrl.u32 %v558, 7
    %v560 = vsub.s32 5, %v559
    %v561 = vrot.slane %v536, %v560
    %v562 = vlaneseq
    %v563 = vshrl.u32 %v562, 7
    %v564 = vsub.s32 6, %v563
    %v565 = vrot.slane %v536, %v564
    %v566 = vlaneseq
    %v567 = vshrl.u32 %v566, 7
    %v568 = vsub.s32 7, %v567
    %v569 = vrot.slane %v536, %v568
    %v578 = vsub.f32 %v468, %v541
    %v579 = vsub.f32 %v469, %v545
    %v580 = vsub.f32 %v470, %v549
    %v581 = vsub.f32 %v471, %v553
    %v582 = vsub.f32 %v472, %v557
    %v583 = vsub.f32 %v473, %v561
    %v584 = vsub.f32 %v474, %v565
    %v585 = vsub.f32 %v475, %v569
    %v586 = vmul.f32 %v578, 1.442695
    %v587 = vpow.pop %v586
    %v588 = vmul.f32 %v579, 1.442695
    %v589 = vpow.pop %v588
    %v590 = vmul.f32 %v580, 1.442695
    %v591 = vpow.pop %v590
    %v592 = vmul.f32 %v581, 1.442695
    %v593 = vpow.pop %v592
    %v594 = vmul.f32 %v582, 1.442695
    %v595 = vpow.pop %v594
    %v596 = vmul.f32 %v583, 1.442695
    %v597 = vpow.pop %v596
    %v598 = vmul.f32 %v584, 1.442695
    %v599 = vpow.pop %v598
    %v600 = vmul.f32 %v585, 1.442695
    %v601 = vpow.pop %v600
    %610 = vset.pattern.permute.xlu0 0
    %611 = vperm.xlu0 %610, %v587
    %v612 = vpop.permute.xlu0 %611
    %613 = vset.pattern.permute.xlu0 0
    %614 = vperm.xlu0 %613, %v589
    %v615 = vpop.permute.xlu0 %614
    %616 = vset.pattern.permute.xlu0 0
    %617 = vperm.xlu0 %616, %v591
    %v618 = vpop.permute.xlu0 %617
    %619 = vset.pattern.permute.xlu0 0
    %620 = vperm.xlu0 %619, %v593
    %v621 = vpop.permute.xlu0 %620
    %622 = vset.pattern.permute.xlu0 0
    %623 = vperm.xlu0 %622, %v595
    %v624 = vpop.permute.xlu0 %623
    %625 = vset.pattern.permute.xlu0 0
    %626 = vperm.xlu0 %625, %v597
    %v627 = vpop.permute.xlu0 %626
    %628 = vset.pattern.permute.xlu0 0
    %629 = vperm.xlu0 %628, %v599
    %v630 = vpop.permute.xlu0 %629
    %631 = vset.pattern.permute.xlu0 0
    %632 = vperm.xlu0 %631, %v601
    %v633 = vpop.permute.xlu0 %632
    %v634 = vlaneseq
    %v635 = vshrl.u32 %v634, 7
    %v636 = vsub.s32 %v485, %v635
    %v637 = vrot.slane %v612, %v636
    %v638 = vlaneseq
    %v639 = vshrl.u32 %v638, 7
    %v640 = vsub.s32 %v485, %v639
    %v641 = vrot.slane %v615, %v640
    %v642 = vlaneseq
    %v643 = vshrl.u32 %v642, 7
    %v644 = vsub.s32 %v485, %v643
    %v645 = vrot.slane %v618, %v644
    %v646 = vlaneseq
    %v647 = vshrl.u32 %v646, 7
    %v648 = vsub.s32 %v485, %v647
    %v649 = vrot.slane %v621, %v648
    %v650 = vlaneseq
    %v651 = vshrl.u32 %v650, 7
    %v652 = vsub.s32 %v485, %v651
    %v653 = vrot.slane %v624, %v652
    %v654 = vlaneseq
    %v655 = vshrl.u32 %v654, 7
    %v656 = vsub.s32 %v485, %v655
    %v657 = vrot.slane %v627, %v656
    %v658 = vlaneseq
    %v659 = vshrl.u32 %v658, 7
    %v660 = vsub.s32 %v485, %v659
    %v661 = vrot.slane %v630, %v660
    %v662 = vlaneseq
    %v663 = vshrl.u32 %v662, 7
    %v664 = vsub.s32 %v485, %v663
    %v665 = vrot.slane %v633, %v664
    %v666 = vsel %vm518, %v641, %v637
    %v667 = vsel %vm520, %v645, %v666
    %v668 = vsel %vm522, %v649, %v667
    %v669 = vsel %vm524, %v653, %v668
    %v670 = vsel %vm526, %v657, %v669
    %v671 = vsel %vm528, %v661, %v670
    %v672 = vsel %vm530, %v665, %v671
    %v674 = vsel %vm533, %v672, 0.0
    %675 = vadd.xlane.f32.xlu0 %v674
    %v676 = vpop.xlane.xlu0 %675
    %v678 = vlaneseq
    %v679 = vshrl.u32 %v678, 7
    %v680 = vsub.s32 0, %v679
    %v681 = vrot.slane %v676, %v680
    %v682 = vlaneseq
    %v683 = vshrl.u32 %v682, 7
    %v684 = vsub.s32 1, %v683
    %v685 = vrot.slane %v676, %v684
    %v686 = vlaneseq
    %v687 = vshrl.u32 %v686, 7
    %v688 = vsub.s32 2, %v687
    %v689 = vrot.slane %v676, %v688
    %v690 = vlaneseq
    %v691 = vshrl.u32 %v690, 7
    %v692 = vsub.s32 3, %v691
    %v693 = vrot.slane %v676, %v692
    %v694 = vlaneseq
    %v695 = vshrl.u32 %v694, 7
    %v696 = vsub.s32 4, %v695
    %v697 = vrot.slane %v676, %v696
    %v698 = vlaneseq
    %v699 = vshrl.u32 %v698, 7
    %v700 = vsub.s32 5, %v699
    %v701 = vrot.slane %v676, %v700
    %v702 = vlaneseq
    %v703 = vshrl.u32 %v702, 7
    %v704 = vsub.s32 6, %v703
    %v705 = vrot.slane %v676, %v704
    %v706 = vlaneseq
    %v707 = vshrl.u32 %v706, 7
    %v708 = vsub.s32 7, %v707
    %v709 = vrot.slane %v676, %v708
    %v718 = vrcp.pop %v681
    %v719 = vmul.f32 %v587, %v718
    %v720 = vrcp.pop %v685
    %v721 = vmul.f32 %v589, %v720
    %v722 = vrcp.pop %v689
    %v723 = vmul.f32 %v591, %v722
    %v724 = vrcp.pop %v693
    %v725 = vmul.f32 %v593, %v724
    %v726 = vrcp.pop %v697
    %v727 = vmul.f32 %v595, %v726
    %v728 = vrcp.pop %v701
    %v729 = vmul.f32 %v597, %v728
    %v730 = vrcp.pop %v705
    %v731 = vmul.f32 %v599, %v730
    %v732 = vrcp.pop %v709
    %v733 = vmul.f32 %v601, %v732
    %735 = vset.pattern.permute.xlu0 0
    %736 = vperm.xlu0 %735, %v719
    %v737 = vpop.permute.xlu0 %736
    %740 = vset.pattern.permute.xlu0 0
    %741 = vperm.xlu0 %740, %v721
    %v742 = vpop.permute.xlu0 %741
    %745 = vset.pattern.permute.xlu0 0
    %746 = vperm.xlu0 %745, %v723
    %v747 = vpop.permute.xlu0 %746
    %750 = vset.pattern.permute.xlu0 0
    %751 = vperm.xlu0 %750, %v725
    %v752 = vpop.permute.xlu0 %751
    %755 = vset.pattern.permute.xlu0 0
    %756 = vperm.xlu0 %755, %v727
    %v757 = vpop.permute.xlu0 %756
    %760 = vset.pattern.permute.xlu0 0
    %761 = vperm.xlu0 %760, %v729
    %v762 = vpop.permute.xlu0 %761
    %765 = vset.pattern.permute.xlu0 0
    %766 = vperm.xlu0 %765, %v731
    %v767 = vpop.permute.xlu0 %766
    %770 = vset.pattern.permute.xlu0 0
    %771 = vperm.xlu0 %770, %v733
    %v772 = vpop.permute.xlu0 %771
    %v774 = vmul.f32 %v737, %v283
    %v775 = vmul.f32 %v742, %v288
    %v776 = vmul.f32 %v747, %v293
    %v777 = vmul.f32 %v752, %v298
    %v778 = vmul.f32 %v757, %v303
    %v779 = vmul.f32 %v762, %v308
    %v780 = vmul.f32 %v767, %v313
    %v781 = vmul.f32 %v772, %v318
    %v782 = vsel %vm107, %v774, 0.0
    %v783 = vrot.slane %v782, 4
    %v784 = vadd.f32 %v782, %v783
    %v785 = vrot.slane %v784, 2
    %v786 = vadd.f32 %v784, %v785
    %v787 = vrot.slane %v786, 1
    %v788 = vadd.f32 %v786, %v787
    %v789 = vsel %vm107, %v775, 0.0
    %v790 = vrot.slane %v789, 4
    %v791 = vadd.f32 %v789, %v790
    %v792 = vrot.slane %v791, 2
    %v793 = vadd.f32 %v791, %v792
    %v794 = vrot.slane %v793, 1
    %v795 = vadd.f32 %v793, %v794
    %v796 = vsel %vm107, %v776, 0.0
    %v797 = vrot.slane %v796, 4
    %v798 = vadd.f32 %v796, %v797
    %v799 = vrot.slane %v798, 2
    %v800 = vadd.f32 %v798, %v799
    %v801 = vrot.slane %v800, 1
    %v802 = vadd.f32 %v800, %v801
    %v803 = vsel %vm107, %v777, 0.0
    %v804 = vrot.slane %v803, 4
    %v805 = vadd.f32 %v803, %v804
    %v806 = vrot.slane %v805, 2
    %v807 = vadd.f32 %v805, %v806
    %v808 = vrot.slane %v807, 1
    %v809 = vadd.f32 %v807, %v808
    %v810 = vsel %vm107, %v778, 0.0
    %v811 = vrot.slane %v810, 4
    %v812 = vadd.f32 %v810, %v811
    %v813 = vrot.slane %v812, 2
    %v814 = vadd.f32 %v812, %v813
    %v815 = vrot.slane %v814, 1
    %v816 = vadd.f32 %v814, %v815
    %v817 = vsel %vm107, %v779, 0.0
    %v818 = vrot.slane %v817, 4
    %v819 = vadd.f32 %v817, %v818
    %v820 = vrot.slane %v819, 2
    %v821 = vadd.f32 %v819, %v820
    %v822 = vrot.slane %v821, 1
    %v823 = vadd.f32 %v821, %v822
    %v824 = vsel %vm107, %v780, 0.0
    %v825 = vrot.slane %v824, 4
    %v826 = vadd.f32 %v824, %v825
    %v827 = vrot.slane %v826, 2
    %v828 = vadd.f32 %v826, %v827
    %v829 = vrot.slane %v828, 1
    %v830 = vadd.f32 %v828, %v829
    %v831 = vsel %vm107, %v781, 0.0
    %v832 = vrot.slane %v831, 4
    %v833 = vadd.f32 %v831, %v832
    %v834 = vrot.slane %v833, 2
    %v835 = vadd.f32 %v833, %v834
    %v836 = vrot.slane %v835, 1
    %v837 = vadd.f32 %v835, %v836
    %v846 = vsel %vm518, %v795, %v788
    %v847 = vsel %vm520, %v802, %v846
    %v848 = vsel %vm522, %v809, %v847
    %v849 = vsel %vm524, %v816, %v848
    %v850 = vsel %vm526, %v823, %v849
    %v851 = vsel %vm528, %v830, %v850
    %v852 = vsel %vm530, %v837, %v851
    %854 = vst.msk [vmem:[#allocation11] sm:$0xff] %vm107, %v852
    %v855 = vlaneseq
    %v856 = vshrl.u32 %v855, 7
    %v857 = vsub.s32 %v485, %v856
    %v858 = vrot.slane %v737, %v857
    %v859 = vlaneseq
    %v860 = vshrl.u32 %v859, 7
    %v861 = vsub.s32 %v485, %v860
    %v862 = vrot.slane %v742, %v861
    %v863 = vlaneseq
    %v864 = vshrl.u32 %v863, 7
    %v865 = vsub.s32 %v485, %v864
    %v866 = vrot.slane %v747, %v865
    %v867 = vlaneseq
    %v868 = vshrl.u32 %v867, 7
    %v869 = vsub.s32 %v485, %v868
    %v870 = vrot.slane %v752, %v869
    %v871 = vlaneseq
    %v872 = vshrl.u32 %v871, 7
    %v873 = vsub.s32 %v485, %v872
    %v874 = vrot.slane %v757, %v873
    %v875 = vlaneseq
    %v876 = vshrl.u32 %v875, 7
    %v877 = vsub.s32 %v485, %v876
    %v878 = vrot.slane %v762, %v877
    %v879 = vlaneseq
    %v880 = vshrl.u32 %v879, 7
    %v881 = vsub.s32 %v485, %v880
    %v882 = vrot.slane %v767, %v881
    %v883 = vlaneseq
    %v884 = vshrl.u32 %v883, 7
    %v885 = vsub.s32 %v485, %v884
    %v886 = vrot.slane %v772, %v885
    %v887 = vsel %vm518, %v862, %v858
    %v888 = vsel %vm520, %v866, %v887
    %v889 = vsel %vm522, %v870, %v888
    %v890 = vsel %vm524, %v874, %v889
    %v891 = vsel %vm526, %v878, %v890
    %v892 = vsel %vm528, %v882, %v891
    %v893 = vsel %vm530, %v886, %v892
    %895 = vst.msk [vmem:[#allocation12] sm:$0xff] %vm533, %v893
    // Predicated region
    $region50: #{tpu_custom_call.1} parent=1 // pred_check
      _
    $region51: #{tpu_custom_call.1} parent=1 // pred_check_branch
      %897 = sbr.rel (0) target = $region53
    $region52: #{tpu_custom_call.1} parent=1 // pred_region
      %s899 = ssub.s32 128, 128
      %900 = vsyncadd [#allocation5], %s899
      %s902 = sshll.u32 [#allocation11], 4
      %s903 = int_to_ptr.vmem [resolvable:$true] %s902
      %905 = dma.vmem_to_hbm [thread:$0]  %s903, 128, %s8, [#allocation5]
    $region53: #{tpu_custom_call.1} parent=1 // pred_fallthru
      _
    // Predicated region
    $region54: #{tpu_custom_call.1} parent=1 // pred_check
      _
    $region55: #{tpu_custom_call.1} parent=1 // pred_check_branch
      %907 = sbr.rel (0) target = $region57
    $region56: #{tpu_custom_call.1} parent=1 // pred_region
      %s909 = ssub.s32 128, 128
      %910 = vsyncadd [#allocation13], %s909
      %s912 = sshll.u32 [#allocation12], 4
      %s913 = int_to_ptr.vmem [resolvable:$true] %s912
      %915 = dma.vmem_to_hbm [thread:$0]  %s913, 128, %s9, [#allocation13]
    $region57: #{tpu_custom_call.1} parent=1 // pred_fallthru
      _
    // Predicated region
    $region58: #{tpu_custom_call.1} parent=1 // pred_check
      _
    $region59: #{tpu_custom_call.1} parent=1 // pred_check_branch
      %917 = sbr.rel (0) target = $region61
    $region60: #{tpu_custom_call.1} parent=1 // pred_region
      %918 = dma.done [#allocation5], 128
    $region61: #{tpu_custom_call.1} parent=1 // pred_fallthru
      _
    // Predicated region
    $region62: #{tpu_custom_call.1} parent=1 // pred_check
      _
    $region63: #{tpu_custom_call.1} parent=1 // pred_check_branch
      %920 = sbr.rel (0) target = $region65
    $region64: #{tpu_custom_call.1} parent=1 // pred_region
      %921 = dma.done [#allocation13], 128
    $region65: #{tpu_custom_call.1} parent=1 // pred_fallthru
      _
    %922 = vsyncpa [#allocation4], 1
    %923 = vsyncpa [#allocation7], 1
    %924 = vsyncpa [#allocation10], 1
    %925 = vsyncpa [#allocation5], 1
    %926 = vsyncpa [#allocation13], 1

</llo_original>
